<compile_context>
chip_gen: v5e
topology: v5e:2x2
jax: 0.10.0
libtpu: 0.0.40
codegen_flags: <defaults>
</compile_context>

<pallas_src>
import numpy as np
import jax
import jax.numpy as jnp
from jax.experimental import pallas as pl
from jax.experimental.pallas import tpu as pltpu

_PI = float(np.pi)
_HALF_PI = float(np.pi / 2.0)

# Max pixels per (t_h, W) spatial tile.  ~12 B/px live per step (depth in +
# 2-channel out), double-buffered -> <= ~6 MiB: comfortably inside the scoped
# VMEM defaults of v5e (16 MiB), v6e (32 MiB) and v7x (32 of 64 MiB physical).
_MAX_TILE_PX = 256 * 1024


def _fast_recip(d):
    """1/d via EUP approximate reciprocal + one Newton step (~1e-7 relative).

    Callers guarantee d is finite and bounded away from 0 (so the Newton step
    never sees inf * 0)."""
    r0 = pl.reciprocal(d, approx=True)
    return r0 * (2.0 - d * r0)


def _atan(t):
    """float32 arctangent from basic ops (Cephes atanf reduction + polynomial).

    The two range-reduction divides of the classic formulation are merged into
    a single num/den pair evaluated with the EUP reciprocal.  |t| is clamped to
    1e30 so huge / inf inputs stay on the finite "big" branch (result ~ pi/2).
    Max error ~2e-7."""
    at = jnp.minimum(jnp.abs(t), 1e30)
    big = at > 2.414213562373095        # tan(3*pi/8)
    mid = at > 0.4142135623730951       # tan(pi/8)
    num = jnp.where(big, -1.0, jnp.where(mid, at - 1.0, at))
    den = jnp.where(big, at, jnp.where(mid, at + 1.0, 1.0))
    xr = num * _fast_recip(den)
    y0 = jnp.where(big, _HALF_PI, jnp.where(mid, 0.25 * _PI, 0.0))
    z = xr * xr
    p = (((8.05374449538e-2 * z - 1.38776856032e-1) * z
          + 1.99777106478e-1) * z - 3.33329491539e-1)
    r = y0 + (p * z * xr + xr)
    return jnp.where(t < 0.0, -r, r)


def _acos(u):
    """acos(u) for |u| <= 1; (1-u)(1+u) avoids cancellation near the poles."""
    s = jnp.maximum(jnp.sqrt((1.0 - u) * (1.0 + u)), 1e-30)
    return _HALF_PI - _atan(u * _fast_recip(s))


def _depth3d_kernel(scal_ref, hfac_ref, wfac_ref, d_ref, out_ref):
    # scal_ref: SMEM (4*B,) = [trans0, trans1, cos(pi*rot), sin(pi*rot)] per b
    # hfac_ref: VMEM (t_h, 2) = [sin(theta0), cos(theta0)]   (per-row factors)
    # wfac_ref: VMEM (2, W)   = [cos(phi0), sin(phi0)]       (per-col factors)
    # d_ref   : VMEM (t_h, W) depth tile for batch b
    # out_ref : VMEM (2, t_h, W) -> channel 0 = theta, channel 1 = phi
    b = pl.program_id(1)
    base = 4 * b
    t0 = scal_ref[base + 0]
    t1 = scal_ref[base + 1]
    cr = scal_ref[base + 2]
    sr = scal_ref[base + 3]

    d = d_ref[...]                       # (t_h, W)
    st = hfac_ref[:, 0:1]                # (t_h, 1) -> broadcasts across lanes
    ct = hfac_ref[:, 1:2]                # (t_h, 1)
    cp = wfac_ref[0:1, :]                # (1, W)   -> broadcasts across sublanes
    sp = wfac_ref[1:2, :]                # (1, W)

    # Rebuild gx*d, gy*d, gz*d from the rank-1 factors (gx = st*cp, ...).
    td = d * st                          # sin(theta0) * depth, shared by x_, y_
    x_ = td * cp + t0
    y_ = td * sp + t1
    z = d * ct

    x = x_ * cr - y_ * sr
    y = x_ * sr + y_ * cr

    r = jnp.sqrt(x * x + y * y + z * z) + 1e-5     # r >= 1e-5 > 0
    theta = _acos(z * _fast_recip(r)) * (2.0 / _PI) - 1.0

    quad = jnp.where(x < 0.0, jnp.where(y >= 0.0, _PI, -_PI), 0.0)
    # Exact divide kept here: x + 1e-5 can be arbitrarily small (review note).
    phi = (_atan(y / (x + 1e-5)) + quad) * (1.0 / _PI)

    out_ref[0, :, :] = theta
    out_ref[1, :, :] = phi


def _make_factors(height, width):
    """Rank-1 sphere-direction factors, O(H + W) data instead of O(H*W).

    Mirrors the PyTorch __init__ grid: gh = -1 + 2h/H, gw = -1 + 2w/W."""
    gh = np.arange(height, dtype=np.float64) * (2.0 / height) - 1.0
    gw = np.arange(width, dtype=np.float64) * (2.0 / width) - 1.0
    theta0 = gh * (np.pi / 2.0) + np.pi / 2.0
    phi0 = gw * np.pi
    hfac = np.stack([np.sin(theta0), np.cos(theta0)], axis=1).astype(np.float32)  # (H, 2)
    wfac = np.stack([np.cos(phi0), np.sin(phi0)], axis=0).astype(np.float32)      # (2, W)
    return hfac, wfac


def _pick_tile_rows(n_rows, n_cols, batch):
    """Rows per spatial tile: multiple of 8 (f32 sublanes), capped by the VMEM
    budget, split >= 2 ways when batch == 1 so both v7x TensorCores get work."""
    if n_rows <= 8:
        return n_rows
    aligned_rows = (n_rows // 8) * 8
    budget_rows = max(8, (_MAX_TILE_PX // max(n_cols, 1)) // 8 * 8)
    t = min(aligned_rows, budget_rows)
    if batch == 1:
        t = min(t, max(8, ((n_rows + 1) // 2 + 7) // 8 * 8))
    # Prefer a divisor of n_rows (avoids ragged boundary blocks); not required.
    tt = t
    while tt >= 8 and n_rows % tt != 0:
        tt -= 8
    return tt if tt >= 8 else t


def depth3d_grid_gen_with_mask_cf(depth, trans0, trans1, rotate, height, width):
    """Channels-first variant: depth [B,H,W,1] -> [B,2,H,W] (theta, phi).

    This is the zero-overhead output layout (no post-kernel transpose); prefer
    it when the consumer can take channels-first data."""
    B, H, W, C = depth.shape
    assert (H, W, C) == (height, width, 1)

    depth_r = depth.astype(jnp.float32).reshape(B, H, W)        # free reshape
    hfac_np, wfac_np = _make_factors(H, W)
    hfac = jnp.asarray(hfac_np)                                 # (H, 2)
    wfac = jnp.asarray(wfac_np)                                 # (2, W)

    rz = rotate.reshape(B).astype(jnp.float32) * _PI
    scal = jnp.stack([trans0.reshape(B).astype(jnp.float32),
                      trans1.reshape(B).astype(jnp.float32),
                      jnp.cos(rz), jnp.sin(rz)], axis=1).reshape(4 * B)  # (4B,)

    t_h = _pick_tile_rows(H, W, B)
    n_s = pl.cdiv(H, t_h)

    out_cf = pl.pallas_call(
        _depth3d_kernel,
        out_shape=jax.ShapeDtypeStruct((B, 2, H, W), jnp.float32),
        grid=(n_s, B),               # batch innermost: hfac/wfac blocks reused
        in_specs=[
            pl.BlockSpec(memory_space=pltpu.MemorySpace.SMEM),        # scalars
            pl.BlockSpec((t_h, 2), lambda s, b: (s, 0)),              # hfac
            pl.BlockSpec((2, W), lambda s, b: (0, 0)),                # wfac
            pl.BlockSpec((None, t_h, W), lambda s, b: (b, s, 0)),     # depth
        ],
        out_specs=pl.BlockSpec((None, 2, t_h, W), lambda s, b: (b, 0, s, 0)),
        compiler_params=pltpu.CompilerParams(
            dimension_semantics=("parallel", "parallel"),
            # Explicit, conservative limit (do not assume v6e's 128 MiB).
            vmem_limit_bytes=32 * 1024 * 1024),
    )(scal, hfac, wfac, depth_r)
    return out_cf


def depth3d_grid_gen_with_mask(depth, trans0, trans1, rotate, height, width):
    """PyTorch-parity entry point: depth [B,H,W,1] -> [B,H,W,2] (theta, phi)."""
    out_cf = depth3d_grid_gen_with_mask_cf(depth, trans0, trans1, rotate,
                                           height, width)
    # TODO(synk): fuse this 2-channel lane interleave into the kernel output so
    # the channels-last layout needs no XLA transpose.
    return jnp.moveaxis(out_cf, 1, -1)


def _reference(depth, trans0, trans1, rotate, height, width):
    """Pure-JAX mirror of the PyTorch forward (uses jnp.arccos / jnp.arctan)."""
    hfac, wfac = _make_factors(height, width)
    st = jnp.asarray(hfac[:, 0]).reshape(1, height, 1, 1)
    ct = jnp.asarray(hfac[:, 1]).reshape(1, height, 1, 1)
    cp = jnp.asarray(wfac[0]).reshape(1, 1, width, 1)
    sp = jnp.asarray(wfac[1]).reshape(1, 1, width, 1)
    gx = st * cp
    gy = st * sp
    gz = jnp.broadcast_to(ct, (1, height, width, 1))

    B = depth.shape[0]
    t0 = trans0.reshape(B, 1, 1, 1)
    t1 = trans1.reshape(B, 1, 1, 1)
    rz = rotate.reshape(B, 1, 1, 1) * np.pi
    x_ = gx * depth + t0
    y_ = gy * depth + t1
    z = gz * depth
    x = x_ * jnp.cos(rz) - y_ * jnp.sin(rz)
    y = x_ * jnp.sin(rz) + y_ * jnp.cos(rz)
    r = jnp.sqrt(x * x + y * y + z * z) + 1e-5
    theta = jnp.arccos(z / r) / (np.pi / 2.0) - 1.0
    phi = jnp.arctan(y / (x + 1e-5)) + np.pi * (x < 0).astype(jnp.float32) * (
        (y >= 0).astype(jnp.float32) - (y < 0).astype(jnp.float32))
    phi = phi / np.pi
    return jnp.concatenate([theta, phi], axis=3)


if __name__ == "__main__":
    B, H, W = 2, 16, 16
    key = jax.random.PRNGKey(0)
    k1, k2, k3, k4 = jax.random.split(key, 4)
    depth = jax.random.normal(k1, (B, H, W, 1), dtype=jnp.float32)
    trans0 = jax.random.normal(k2, (B,), dtype=jnp.float32)
    trans1 = jax.random.normal(k3, (B,), dtype=jnp.float32)
    rotate = jax.random.normal(k4, (B,), dtype=jnp.float32)

    out = depth3d_grid_gen_with_mask(depth, trans0, trans1, rotate, H, W)
    out = jax.block_until_ready(out)

    ref = _reference(depth, trans0, trans1, rotate, H, W)
    assert out.shape == (B, H, W, 2), out.shape
    assert out.dtype == jnp.float32
    np.testing.assert_allclose(np.asarray(out), np.asarray(ref),
                               rtol=5e-4, atol=5e-4)
    print("KERNEL_OK")
</pallas_src>

<mosaic_0001>
module attributes {stable_mosaic.version = 11 : i64} {
  func.func @_depth3d_kernel(%arg0: i32, %arg1: i32, %arg2: memref<8xf32, #tpu.memory_space<smem>>, %arg3: memref<16x2xf32, #tpu.memory_space<vmem>>, %arg4: memref<2x16xf32, #tpu.memory_space<vmem>>, %arg5: memref<1x16x16xf32, #tpu.memory_space<vmem>>, %arg6: memref<1x2x16x16xf32, #tpu.memory_space<vmem>>) attributes {dimension_semantics = [#tpu.dimension_semantics<parallel>, #tpu.dimension_semantics<parallel>], iteration_bounds = array<i64: 1, 2>, scalar_prefetch = 0 : i64, scratch_operands = 0 : i64, tpu.core_type = #tpu.core_type<tc>, window_params = [{transform_indices = @transform_0, window_bounds = array<i64: 8>}, {transform_indices = @transform_1, window_bounds = array<i64: 16, 2>}, {pipeline_mode = #tpu.pipeline_mode<synchronous>, transform_indices = @transform_2, window_bounds = array<i64: 2, 16>}, {transform_indices = @transform_3, window_bounds = array<i64: 1, 16, 16>}, {transform_indices = @transform_4, window_bounds = array<i64: 1, 2, 16, 16>}]} {
    %c4_i32 = arith.constant 4 : i32
    %0 = arith.muli %c4_i32, %arg1 : i32
    %c0_i32 = arith.constant 0 : i32
    %1 = arith.addi %0, %c0_i32 : i32
    %2 = arith.index_cast %1 : i32 to index
    %3 = memref.load %arg2[%2] : memref<8xf32, #tpu.memory_space<smem>>
    %c1_i32 = arith.constant 1 : i32
    %4 = arith.addi %0, %c1_i32 : i32
    %5 = arith.index_cast %4 : i32 to index
    %6 = memref.load %arg2[%5] : memref<8xf32, #tpu.memory_space<smem>>
    %c2_i32 = arith.constant 2 : i32
    %7 = arith.addi %0, %c2_i32 : i32
    %8 = arith.index_cast %7 : i32 to index
    %9 = memref.load %arg2[%8] : memref<8xf32, #tpu.memory_space<smem>>
    %c3_i32 = arith.constant 3 : i32
    %10 = arith.addi %0, %c3_i32 : i32
    %11 = arith.index_cast %10 : i32 to index
    %12 = memref.load %arg2[%11] : memref<8xf32, #tpu.memory_space<smem>>
    %c0 = arith.constant 0 : index
    %c0_0 = arith.constant 0 : index
    %c0_1 = arith.constant 0 : index
    %13 = vector.load %arg5[%c0, %c0_0, %c0_1] : memref<1x16x16xf32, #tpu.memory_space<vmem>>, vector<1x16x16xf32>
    %14 = vector.shape_cast %13 : vector<1x16x16xf32> to vector<16x16xf32>
    %c0_2 = arith.constant 0 : index
    %c0_3 = arith.constant 0 : index
    %15 = vector.load %arg3[%c0_2, %c0_3] : memref<16x2xf32, #tpu.memory_space<vmem>>, vector<16x1xf32>
    %c0_4 = arith.constant 0 : index
    %c1 = arith.constant 1 : index
    %16 = vector.load %arg3[%c0_4, %c1] : memref<16x2xf32, #tpu.memory_space<vmem>>, vector<16x1xf32>
    %c0_5 = arith.constant 0 : index
    %c0_6 = arith.constant 0 : index
    %17 = vector.load %arg4[%c0_5, %c0_6] : memref<2x16xf32, #tpu.memory_space<vmem>>, vector<1x16xf32>
    %c1_7 = arith.constant 1 : index
    %c0_8 = arith.constant 0 : index
    %18 = vector.load %arg4[%c1_7, %c0_8] : memref<2x16xf32, #tpu.memory_space<vmem>>, vector<1x16xf32>
    %19 = vector.broadcast %15 : vector<16x1xf32> to vector<16x16xf32>
    %20 = arith.mulf %14, %19 : vector<16x16xf32>
    %21 = vector.broadcast %17 : vector<1x16xf32> to vector<16x16xf32>
    %22 = arith.mulf %20, %21 : vector<16x16xf32>
    %23 = vector.broadcast %3 : f32 to vector<16x16xf32>
    %24 = arith.addf %22, %23 : vector<16x16xf32>
    %25 = vector.broadcast %18 : vector<1x16xf32> to vector<16x16xf32>
    %26 = arith.mulf %20, %25 : vector<16x16xf32>
    %27 = vector.broadcast %6 : f32 to vector<16x16xf32>
    %28 = arith.addf %26, %27 : vector<16x16xf32>
    %29 = vector.broadcast %16 : vector<16x1xf32> to vector<16x16xf32>
    %30 = arith.mulf %14, %29 : vector<16x16xf32>
    %31 = vector.broadcast %9 : f32 to vector<16x16xf32>
    %32 = arith.mulf %24, %31 : vector<16x16xf32>
    %33 = vector.broadcast %12 : f32 to vector<16x16xf32>
    %34 = arith.mulf %28, %33 : vector<16x16xf32>
    %35 = arith.subf %32, %34 : vector<16x16xf32>
    %36 = vector.broadcast %12 : f32 to vector<16x16xf32>
    %37 = arith.mulf %24, %36 : vector<16x16xf32>
    %38 = vector.broadcast %9 : f32 to vector<16x16xf32>
    %39 = arith.mulf %28, %38 : vector<16x16xf32>
    %40 = arith.addf %37, %39 : vector<16x16xf32>
    %41 = arith.mulf %35, %35 : vector<16x16xf32>
    %42 = arith.mulf %40, %40 : vector<16x16xf32>
    %43 = arith.addf %41, %42 : vector<16x16xf32>
    %44 = arith.mulf %30, %30 : vector<16x16xf32>
    %45 = arith.addf %43, %44 : vector<16x16xf32>
    %46 = math.sqrt %45 : vector<16x16xf32>
    %cst = arith.constant 9.99999974E-6 : f32
    %47 = vector.broadcast %cst : f32 to vector<16x16xf32>
    %48 = arith.addf %46, %47 : vector<16x16xf32>
    %49 = tpu.reciprocal %48 {approx = true} : vector<16x16xf32> -> vector<16x16xf32>
    %50 = arith.mulf %48, %49 : vector<16x16xf32>
    %cst_9 = arith.constant 2.000000e+00 : f32
    %51 = vector.broadcast %cst_9 : f32 to vector<16x16xf32>
    %52 = arith.subf %51, %50 : vector<16x16xf32>
    %53 = arith.mulf %49, %52 : vector<16x16xf32>
    %54 = arith.mulf %30, %53 : vector<16x16xf32>
    %cst_10 = arith.constant 1.000000e+00 : f32
    %55 = vector.broadcast %cst_10 : f32 to vector<16x16xf32>
    %56 = arith.subf %55, %54 : vector<16x16xf32>
    %cst_11 = arith.constant 1.000000e+00 : f32
    %57 = vector.broadcast %cst_11 : f32 to vector<16x16xf32>
    %58 = arith.addf %57, %54 : vector<16x16xf32>
    %59 = arith.mulf %56, %58 : vector<16x16xf32>
    %60 = math.sqrt %59 : vector<16x16xf32>
    %cst_12 = arith.constant 1.000000e-30 : f32
    %61 = vector.broadcast %cst_12 : f32 to vector<16x16xf32>
    %62 = arith.maximumf %60, %61 : vector<16x16xf32>
    %63 = tpu.reciprocal %62 {approx = true} : vector<16x16xf32> -> vector<16x16xf32>
    %64 = arith.mulf %62, %63 : vector<16x16xf32>
    %cst_13 = arith.constant 2.000000e+00 : f32
    %65 = vector.broadcast %cst_13 : f32 to vector<16x16xf32>
    %66 = arith.subf %65, %64 : vector<16x16xf32>
    %67 = arith.mulf %63, %66 : vector<16x16xf32>
    %68 = arith.mulf %54, %67 : vector<16x16xf32>
    %69 = math.absf %68 : vector<16x16xf32>
    %cst_14 = arith.constant 1.000000e+30 : f32
    %70 = vector.broadcast %cst_14 : f32 to vector<16x16xf32>
    %71 = arith.minimumf %69, %70 : vector<16x16xf32>
    %cst_15 = arith.constant 2.41421366 : f32
    %72 = vector.broadcast %cst_15 : f32 to vector<16x16xf32>
    %73 = arith.cmpf ogt, %71, %72 : vector<16x16xf32>
    %cst_16 = arith.constant 0.414213568 : f32
    %74 = vector.broadcast %cst_16 : f32 to vector<16x16xf32>
    %75 = arith.cmpf ogt, %71, %74 : vector<16x16xf32>
    %cst_17 = arith.constant 1.000000e+00 : f32
    %76 = vector.broadcast %cst_17 : f32 to vector<16x16xf32>
    %77 = arith.subf %71, %76 : vector<16x16xf32>
    %78 = arith.select %75, %77, %71 : vector<16x16xi1>, vector<16x16xf32>
    %cst_18 = arith.constant -1.000000e+00 : f32
    %79 = vector.broadcast %cst_18 : f32 to vector<16x16xf32>
    %80 = arith.select %73, %79, %78 : vector<16x16xi1>, vector<16x16xf32>
    %cst_19 = arith.constant 1.000000e+00 : f32
    %81 = vector.broadcast %cst_19 : f32 to vector<16x16xf32>
    %82 = arith.addf %71, %81 : vector<16x16xf32>
    %cst_20 = arith.constant 1.000000e+00 : f32
    %83 = vector.broadcast %cst_20 : f32 to vector<16x16xf32>
    %84 = arith.select %75, %82, %83 : vector<16x16xi1>, vector<16x16xf32>
    %85 = arith.select %73, %71, %84 : vector<16x16xi1>, vector<16x16xf32>
    %86 = tpu.reciprocal %85 {approx = true} : vector<16x16xf32> -> vector<16x16xf32>
    %87 = arith.mulf %85, %86 : vector<16x16xf32>
    %cst_21 = arith.constant 2.000000e+00 : f32
    %88 = vector.broadcast %cst_21 : f32 to vector<16x16xf32>
    %89 = arith.subf %88, %87 : vector<16x16xf32>
    %90 = arith.mulf %86, %89 : vector<16x16xf32>
    %91 = arith.mulf %80, %90 : vector<16x16xf32>
    %cst_22 = arith.constant 0.785398185 : f32
    %cst_23 = arith.constant 0.000000e+00 : f32
    %92 = vector.broadcast %cst_22 : f32 to vector<16x16xf32>
    %93 = vector.broadcast %cst_23 : f32 to vector<16x16xf32>
    %94 = arith.select %75, %92, %93 : vector<16x16xi1>, vector<16x16xf32>
    %cst_24 = arith.constant 1.57079637 : f32
    %95 = vector.broadcast %cst_24 : f32 to vector<16x16xf32>
    %96 = arith.select %73, %95, %94 : vector<16x16xi1>, vector<16x16xf32>
    %97 = arith.mulf %91, %91 : vector<16x16xf32>
    %cst_25 = arith.constant 0.0805374458 : f32
    %98 = vector.broadcast %cst_25 : f32 to vector<16x16xf32>
    %99 = arith.mulf %98, %97 : vector<16x16xf32>
    %cst_26 = arith.constant 0.138776854 : f32
    %100 = vector.broadcast %cst_26 : f32 to vector<16x16xf32>
    %101 = arith.subf %99, %100 : vector<16x16xf32>
    %102 = arith.mulf %101, %97 : vector<16x16xf32>
    %cst_27 = arith.constant 0.199777111 : f32
    %103 = vector.broadcast %cst_27 : f32 to vector<16x16xf32>
    %104 = arith.addf %102, %103 : vector<16x16xf32>
    %105 = arith.mulf %104, %97 : vector<16x16xf32>
    %cst_28 = arith.constant 0.333329499 : f32
    %106 = vector.broadcast %cst_28 : f32 to vector<16x16xf32>
    %107 = arith.subf %105, %106 : vector<16x16xf32>
    %108 = arith.mulf %107, %97 : vector<16x16xf32>
    %109 = arith.mulf %108, %91 : vector<16x16xf32>
    %110 = arith.addf %109, %91 : vector<16x16xf32>
    %111 = arith.addf %96, %110 : vector<16x16xf32>
    %cst_29 = arith.constant 0.000000e+00 : f32
    %112 = vector.broadcast %cst_29 : f32 to vector<16x16xf32>
    %113 = arith.cmpf olt, %68, %112 : vector<16x16xf32>
    %cst_30 = arith.constant 0.000000e+00 : f32
    %114 = vector.broadcast %cst_30 : f32 to vector<16x16xf32>
    %115 = arith.subf %114, %111 : vector<16x16xf32>
    %116 = arith.select %113, %115, %111 : vector<16x16xi1>, vector<16x16xf32>
    %cst_31 = arith.constant 1.57079637 : f32
    %117 = vector.broadcast %cst_31 : f32 to vector<16x16xf32>
    %118 = arith.subf %117, %116 : vector<16x16xf32>
    %cst_32 = arith.constant 0.636619746 : f32
    %119 = vector.broadcast %cst_32 : f32 to vector<16x16xf32>
    %120 = arith.mulf %118, %119 : vector<16x16xf32>
    %cst_33 = arith.constant 1.000000e+00 : f32
    %121 = vector.broadcast %cst_33 : f32 to vector<16x16xf32>
    %122 = arith.subf %120, %121 : vector<16x16xf32>
    %cst_34 = arith.constant 0.000000e+00 : f32
    %123 = vector.broadcast %cst_34 : f32 to vector<16x16xf32>
    %124 = arith.cmpf olt, %35, %123 : vector<16x16xf32>
    %cst_35 = arith.constant 0.000000e+00 : f32
    %125 = vector.broadcast %cst_35 : f32 to vector<16x16xf32>
    %126 = arith.cmpf oge, %40, %125 : vector<16x16xf32>
    %cst_36 = arith.constant 3.14159274 : f32
    %cst_37 = arith.constant -3.14159274 : f32
    %127 = vector.broadcast %cst_36 : f32 to vector<16x16xf32>
    %128 = vector.broadcast %cst_37 : f32 to vector<16x16xf32>
    %129 = arith.select %126, %127, %128 : vector<16x16xi1>, vector<16x16xf32>
    %cst_38 = arith.constant 0.000000e+00 : f32
    %130 = vector.broadcast %cst_38 : f32 to vector<16x16xf32>
    %131 = arith.select %124, %129, %130 : vector<16x16xi1>, vector<16x16xf32>
    %cst_39 = arith.constant 9.99999974E-6 : f32
    %132 = vector.broadcast %cst_39 : f32 to vector<16x16xf32>
    %133 = arith.addf %35, %132 : vector<16x16xf32>
    %134 = arith.divf %40, %133 : vector<16x16xf32>
    %135 = math.absf %134 : vector<16x16xf32>
    %cst_40 = arith.constant 1.000000e+30 : f32
    %136 = vector.broadcast %cst_40 : f32 to vector<16x16xf32>
    %137 = arith.minimumf %135, %136 : vector<16x16xf32>
    %cst_41 = arith.constant 2.41421366 : f32
    %138 = vector.broadcast %cst_41 : f32 to vector<16x16xf32>
    %139 = arith.cmpf ogt, %137, %138 : vector<16x16xf32>
    %cst_42 = arith.constant 0.414213568 : f32
    %140 = vector.broadcast %cst_42 : f32 to vector<16x16xf32>
    %141 = arith.cmpf ogt, %137, %140 : vector<16x16xf32>
    %cst_43 = arith.constant 1.000000e+00 : f32
    %142 = vector.broadcast %cst_43 : f32 to vector<16x16xf32>
    %143 = arith.subf %137, %142 : vector<16x16xf32>
    %144 = arith.select %141, %143, %137 : vector<16x16xi1>, vector<16x16xf32>
    %cst_44 = arith.constant -1.000000e+00 : f32
    %145 = vector.broadcast %cst_44 : f32 to vector<16x16xf32>
    %146 = arith.select %139, %145, %144 : vector<16x16xi1>, vector<16x16xf32>
    %cst_45 = arith.constant 1.000000e+00 : f32
    %147 = vector.broadcast %cst_45 : f32 to vector<16x16xf32>
    %148 = arith.addf %137, %147 : vector<16x16xf32>
    %cst_46 = arith.constant 1.000000e+00 : f32
    %149 = vector.broadcast %cst_46 : f32 to vector<16x16xf32>
    %150 = arith.select %141, %148, %149 : vector<16x16xi1>, vector<16x16xf32>
    %151 = arith.select %139, %137, %150 : vector<16x16xi1>, vector<16x16xf32>
    %152 = tpu.reciprocal %151 {approx = true} : vector<16x16xf32> -> vector<16x16xf32>
    %153 = arith.mulf %151, %152 : vector<16x16xf32>
    %cst_47 = arith.constant 2.000000e+00 : f32
    %154 = vector.broadcast %cst_47 : f32 to vector<16x16xf32>
    %155 = arith.subf %154, %153 : vector<16x16xf32>
    %156 = arith.mulf %152, %155 : vector<16x16xf32>
    %157 = arith.mulf %146, %156 : vector<16x16xf32>
    %cst_48 = arith.constant 0.785398185 : f32
    %cst_49 = arith.constant 0.000000e+00 : f32
    %158 = vector.broadcast %cst_48 : f32 to vector<16x16xf32>
    %159 = vector.broadcast %cst_49 : f32 to vector<16x16xf32>
    %160 = arith.select %141, %158, %159 : vector<16x16xi1>, vector<16x16xf32>
    %cst_50 = arith.constant 1.57079637 : f32
    %161 = vector.broadcast %cst_50 : f32 to vector<16x16xf32>
    %162 = arith.select %139, %161, %160 : vector<16x16xi1>, vector<16x16xf32>
    %163 = arith.mulf %157, %157 : vector<16x16xf32>
    %cst_51 = arith.constant 0.0805374458 : f32
    %164 = vector.broadcast %cst_51 : f32 to vector<16x16xf32>
    %165 = arith.mulf %164, %163 : vector<16x16xf32>
    %cst_52 = arith.constant 0.138776854 : f32
    %166 = vector.broadcast %cst_52 : f32 to vector<16x16xf32>
    %167 = arith.subf %165, %166 : vector<16x16xf32>
    %168 = arith.mulf %167, %163 : vector<16x16xf32>
    %cst_53 = arith.constant 0.199777111 : f32
    %169 = vector.broadcast %cst_53 : f32 to vector<16x16xf32>
    %170 = arith.addf %168, %169 : vector<16x16xf32>
    %171 = arith.mulf %170, %163 : vector<16x16xf32>
    %cst_54 = arith.constant 0.333329499 : f32
    %172 = vector.broadcast %cst_54 : f32 to vector<16x16xf32>
    %173 = arith.subf %171, %172 : vector<16x16xf32>
    %174 = arith.mulf %173, %163 : vector<16x16xf32>
    %175 = arith.mulf %174, %157 : vector<16x16xf32>
    %176 = arith.addf %175, %157 : vector<16x16xf32>
    %177 = arith.addf %162, %176 : vector<16x16xf32>
    %cst_55 = arith.constant 0.000000e+00 : f32
    %178 = vector.broadcast %cst_55 : f32 to vector<16x16xf32>
    %179 = arith.cmpf olt, %134, %178 : vector<16x16xf32>
    %cst_56 = arith.constant 0.000000e+00 : f32
    %180 = vector.broadcast %cst_56 : f32 to vector<16x16xf32>
    %181 = arith.subf %180, %177 : vector<16x16xf32>
    %182 = arith.select %179, %181, %177 : vector<16x16xi1>, vector<16x16xf32>
    %183 = arith.addf %182, %131 : vector<16x16xf32>
    %cst_57 = arith.constant 0.318309873 : f32
    %184 = vector.broadcast %cst_57 : f32 to vector<16x16xf32>
    %185 = arith.mulf %183, %184 : vector<16x16xf32>
    %c0_58 = arith.constant 0 : index
    %c0_59 = arith.constant 0 : index
    %c0_60 = arith.constant 0 : index
    %c0_61 = arith.constant 0 : index
    %186 = vector.load %arg6[%c0_58, %c0_59, %c0_60, %c0_61] : memref<1x2x16x16xf32, #tpu.memory_space<vmem>>, vector<1x1x16x16xf32>
    %187 = vector.shape_cast %186 : vector<1x1x16x16xf32> to vector<16x16xf32>
    %188 = vector.shape_cast %122 : vector<16x16xf32> to vector<1x1x16x16xf32>
    tpu.vector_store %arg6[%c0_58, %c0_59, %c0_60, %c0_61], %188 {strides = array<i32>} : memref<1x2x16x16xf32, #tpu.memory_space<vmem>>, vector<1x1x16x16xf32>,
    %c0_62 = arith.constant 0 : index
    %c1_63 = arith.constant 1 : index
    %c0_64 = arith.constant 0 : index
    %c0_65 = arith.constant 0 : index
    %189 = vector.load %arg6[%c0_62, %c1_63, %c0_64, %c0_65] : memref<1x2x16x16xf32, #tpu.memory_space<vmem>>, vector<1x1x16x16xf32>
    %190 = vector.shape_cast %189 : vector<1x1x16x16xf32> to vector<16x16xf32>
    %191 = vector.shape_cast %185 : vector<16x16xf32> to vector<1x1x16x16xf32>
    tpu.vector_store %arg6[%c0_62, %c1_63, %c0_64, %c0_65], %191 {strides = array<i32>} : memref<1x2x16x16xf32, #tpu.memory_space<vmem>>, vector<1x1x16x16xf32>,
    return
  }
  func.func @transform_0(%arg0: i32, %arg1: i32) -> i32 {
    %c0_i32 = arith.constant 0 : i32
    %c0_i32_0 = arith.constant 0 : i32
    return %c0_i32 : i32
  }
  func.func @transform_1(%arg0: i32, %arg1: i32) -> (i32, i32) {
    %c0_i32 = arith.constant 0 : i32
    %c0_i32_0 = arith.constant 0 : i32
    return %arg0, %c0_i32 : i32, i32
  }
  func.func @transform_2(%arg0: i32, %arg1: i32) -> (i32, i32) {
    %c0_i32 = arith.constant 0 : i32
    %c0_i32_0 = arith.constant 0 : i32
    %c0_i32_1 = arith.constant 0 : i32
    return %c0_i32, %c0_i32_0 : i32, i32
  }
  func.func @transform_3(%arg0: i32, %arg1: i32) -> (i32, i32, i32) {
    %c0_i32 = arith.constant 0 : i32
    %c0_i32_0 = arith.constant 0 : i32
    return %arg1, %arg0, %c0_i32 : i32, i32, i32
  }
  func.func @transform_4(%arg0: i32, %arg1: i32) -> (i32, i32, i32, i32) {
    %c0_i32 = arith.constant 0 : i32
    %c0_i32_0 = arith.constant 0 : i32
    %c0_i32_1 = arith.constant 0 : i32
    return %arg1, %c0_i32, %arg0, %c0_i32_0 : i32, i32, i32, i32
  }
}

</mosaic_0001>

<llo_original>
// kernel: tpu_custom_call.1
$region0: #{tpu_custom_call.1}
  #allocation0 [shape = 'u32[]', space=smem, size = 0x4, offset = 0x4, fixed_abs, tag = 'smem constant byte address 0x4 - core index']
  #allocation1 [shape = 'u32[72,128]{1,0:T(1,128)}', space=vmem, size = 0x9000, scoped, tag = 'internal scratch']
  %s0 = inlined_call_operand.vmem [shape: f32[8], index: 0, kind: input, shape index: {}]
  %s1 = inlined_call_operand.vmem [shape: f32[16,2], index: 1, kind: input, shape index: {}]
  %s2 = inlined_call_operand.vmem [shape: f32[2,16], index: 2, kind: input, shape index: {}]
  %s3 = inlined_call_operand.hbm [shape: f32[2,16,16], index: 3, kind: input, shape index: {}]
  %s4 = inlined_call_operand.hbm [shape: f32[2,2,16,16], index: 4, kind: output, shape index: {}]
  %s5 = sld [smem:[#allocation0]]
  $region57: #{tpu_custom_call.1} parent=0
    _
  %s7 = ssub.s32 1, %s5
  %s8 = scalar_select 0, %s7, %s5
  $region1: #{tpu_custom_call.1} parent=0
    #allocation2 [shape = 'u8[512]{0}', space=smem, size = 0x200, scoped, tag = 'input window, operand 0, single buffered']
    #allocation3 [shape = 's32[2]{0}', space=sflag, size = 0x8, scoped, tag = 'scoped memory for tpu_custom_call.1']
    #allocation4 [shape = 's32[2]{0}', space=sflag, size = 0x8, scoped, tag = 'scoped memory for tpu_custom_call.1']
    #allocation5 [shape = 's32[2]{0}', space=sflag, size = 0x8, scoped, tag = 'scoped memory for tpu_custom_call.1']
    #allocation6 [shape = 'u8[16384]{0}', space=vmem, size = 0x4000, scoped, tag = 'input window, operand 3']
    #allocation7 [shape = 'u8[32768]{0}', space=vmem, size = 0x8000, scoped, tag = 'output window, operand 0']
    %9 = vsyncpa [#allocation5], 0
    %10 = vsyncpa [#allocation3], 0
    %s11 = scalar_lea.sflag [#allocation3], 1
    %12 = vsyncpa %s11, 0
    %13 = vsyncpa [#allocation4], 0
    %s14 = scalar_lea.sflag [#allocation4], 1
    %15 = vsyncpa %s14, 0
    loop: start=0, step=1, limit=4
    $region2: #{tpu_custom_call.1} parent=1 // loop_pre_header
      _
    $region3: #{tpu_custom_call.1} parent=1 // loop_header
      %s17 = sphi 0, %s21
      %p18 = scmp.ge.s32.totalorder %s17, 4
      %s24 = sphi 0, %s36
      %s25 = sphi 0, %s32
      %s26 = sphi 0, %s24
      %s27 = sphi 0, %s25
      %s28 = sphi 0, %s26
      %s29 = sphi 0, %s27
      %s37 = sphi 0, %s37
      %s39 = sphi 0, %s37
      %s40 = sphi 0, %s39
      %s54 = sphi 0, %s40
      %s60 = sphi 0, %s62
      %s63 = sphi 0, %s60
      %s64 = sphi 0, %s63
      %s80 = sphi 0, %s64
      %s84 = sphi 0, %s84
      %s86 = sphi 0, %s84
      %s87 = sphi 0, %s86
      %s101 = sphi 0, %s87
      %s109 = sphi 0, %s111
      %s112 = sphi 0, %s109
      %s113 = sphi 0, %s112
      %s129 = sphi 0, %s113
      %s137 = sphi 0, %s139
      %s140 = sphi 0, %s137
      %s141 = sphi 0, %s140
      %s157 = sphi 0, %s141
    $region4: #{tpu_custom_call.1} parent=1 // loop_header_branch
      %20 = sbr.rel (%p18) target = $region8
    $region5: #{tpu_custom_call.1} parent=1 // loop_body
      %s22 = ssub.s32 %s17, 1
      %s23 = ssub.s32 %s17, 2
      %s30 = sadd.s32 1, %s25
      %p31 = scmp.ge.s32.totalorder %s30, 2
      %s32 = scalar_select %p31, 0, %s30
      %s33 = sadd.s32 1, %s24
      %s34 = scalar_select %p31, %s33, %s24
      %p35 = scmp.ge.s32.totalorder %s34, 1
      %s36 = scalar_select %p35, 0, %s34
      %s38 = sadd.s32 %s37, 1
      %p41 = scmp.eq.s32.totalorder %s17, 1
      %p42 = scmp.ne.s32.totalorder %s37, %s39
      %p43 = scmp.eq.s32.totalorder %s17, 0
      %p44 = por %p42, %p43
      %p45 = scmp.ne.s32.totalorder %s37, %s39
      %p46 = scmp.eq.s32.totalorder %s22, 1
      %p47 = por %p45, %p46
      %p48 = scmp.ne.s32.totalorder %s39, %s40
      %p49 = scmp.eq.s32.totalorder %s22, 0
      %p50 = por %p48, %p49
      %p51 = scmp.ne.s32.totalorder %s39, %s40
      %p52 = scmp.eq.s32.totalorder %s23, 1
      %p53 = por %p51, %p52
      %p55 = scmp.ne.s32.totalorder %s40, %s54
      %p56 = scmp.eq.s32.totalorder %s23, 0
      %p57 = por %p55, %p56
      %s58 = ssub.s32 %s24, %s36
      %p59 = scmp.eq.s32.totalorder %s58, 0
      %s61 = sadd.s32 %s60, 1
      %s62 = scalar_select %p59, %s60, %s61
      %p65 = pneg %p59
      %p66 = scmp.eq.s32.totalorder %s17, 1
      %p67 = por %p65, %p66
      %p68 = scmp.ne.s32.totalorder %s60, %s63
      %p69 = scmp.eq.s32.totalorder %s17, 0
      %p70 = por %p68, %p69
      %p71 = scmp.ne.s32.totalorder %s60, %s63
      %p72 = scmp.eq.s32.totalorder %s22, 1
      %p73 = por %p71, %p72
      %p74 = scmp.ne.s32.totalorder %s63, %s64
      %p75 = scmp.eq.s32.totalorder %s22, 0
      %p76 = por %p74, %p75
      %p77 = scmp.ne.s32.totalorder %s63, %s64
      %p78 = scmp.eq.s32.totalorder %s23, 1
      %p79 = por %p77, %p78
      %p81 = scmp.ne.s32.totalorder %s64, %s80
      %p82 = scmp.eq.s32.totalorder %s23, 0
      %p83 = por %p81, %p82
      %s85 = sadd.s32 %s84, 1
      %p88 = scmp.eq.s32.totalorder %s17, 1
      %p89 = scmp.ne.s32.totalorder %s84, %s86
      %p90 = scmp.eq.s32.totalorder %s17, 0
      %p91 = por %p89, %p90
      %p92 = scmp.ne.s32.totalorder %s84, %s86
      %p93 = scmp.eq.s32.totalorder %s22, 1
      %p94 = por %p92, %p93
      %p95 = scmp.ne.s32.totalorder %s86, %s87
      %p96 = scmp.eq.s32.totalorder %s22, 0
      %p97 = por %p95, %p96
      %p98 = scmp.ne.s32.totalorder %s86, %s87
      %p99 = scmp.eq.s32.totalorder %s23, 1
      %p100 = por %p98, %p99
      %p102 = scmp.ne.s32.totalorder %s87, %s101
      %p103 = scmp.eq.s32.totalorder %s23, 0
      %p104 = por %p102, %p103
      %s105 = ssub.s32 %s25, %s32
      %s106 = ssub.s32 %s24, %s36
      %s107 = sor.u32 %s105, %s106
      %p108 = scmp.eq.s32.totalorder %s107, 0
      %s110 = sadd.s32 %s109, 1
      %s111 = scalar_select %p108, %s109, %s110
      %p114 = pneg %p108
      %p115 = scmp.eq.s32.totalorder %s17, 1
      %p116 = por %p114, %p115
      %p117 = scmp.ne.s32.totalorder %s109, %s112
      %p118 = scmp.eq.s32.totalorder %s17, 0
      %p119 = por %p117, %p118
      %p120 = scmp.ne.s32.totalorder %s109, %s112
      %p121 = scmp.eq.s32.totalorder %s22, 1
      %p122 = por %p120, %p121
      %p123 = scmp.ne.s32.totalorder %s112, %s113
      %p124 = scmp.eq.s32.totalorder %s22, 0
      %p125 = por %p123, %p124
      %p126 = scmp.ne.s32.totalorder %s112, %s113
      %p127 = scmp.eq.s32.totalorder %s23, 1
      %p128 = por %p126, %p127
      %p130 = scmp.ne.s32.totalorder %s113, %s129
      %p131 = scmp.eq.s32.totalorder %s23, 0
      %p132 = por %p130, %p131
      %s133 = ssub.s32 %s25, %s32
      %s134 = ssub.s32 %s24, %s36
      %s135 = sor.u32 %s133, %s134
      %p136 = scmp.eq.s32.totalorder %s135, 0
      %s138 = sadd.s32 %s137, 1
      %s139 = scalar_select %p136, %s137, %s138
      %p142 = pneg %p136
      %p143 = scmp.eq.s32.totalorder %s17, 1
      %p144 = por %p142, %p143
      %p145 = scmp.ne.s32.totalorder %s137, %s140
      %p146 = scmp.eq.s32.totalorder %s17, 0
      %p147 = por %p145, %p146
      %p148 = scmp.ne.s32.totalorder %s137, %s140
      %p149 = scmp.eq.s32.totalorder %s22, 1
      %p150 = por %p148, %p149
      %p151 = scmp.ne.s32.totalorder %s140, %s141
      %p152 = scmp.eq.s32.totalorder %s22, 0
      %p153 = por %p151, %p152
      %p154 = scmp.ne.s32.totalorder %s140, %s141
      %p155 = scmp.eq.s32.totalorder %s23, 1
      %p156 = por %p154, %p155
      %p158 = scmp.ne.s32.totalorder %s141, %s157
      %p159 = scmp.eq.s32.totalorder %s23, 0
      %p160 = por %p158, %p159
      %p161 = scmp.le.s32.totalorder 1, %s17
      %p162 = scmp.lt.s32.totalorder %s17, 3
      %p163 = pnand %p161, %p162
      %p164 = pneg %p163
      // Predicated region
      $region9: #{tpu_custom_call.1} parent=5 // pred_check
        _
      $region10: #{tpu_custom_call.1} parent=5 // pred_check_branch
        %166 = sbr.rel (%p163) target = $region12
      $region11: #{tpu_custom_call.1} parent=5 // pred_region
        %s167 = ssub.s32 %s17, 1
        // Predicated region
        $region13: #{tpu_custom_call.1} parent=11 // pred_check
          %p168 = pneg %p50
        $region14: #{tpu_custom_call.1} parent=11 // pred_check_branch
          %170 = sbr.rel (%p168) target = $region16
        $region15: #{tpu_custom_call.1} parent=11 // pred_region
          %172 = vsyncadd [#allocation5], 0
          %s174 = sshll.u32 %s0, 4
          %s175 = int_to_ptr.vmem [resolvable:$true] %s174
          %177 = dma.vmem_to_smem %s175, 16, [#allocation2], [#allocation5]
        $region16: #{tpu_custom_call.1} parent=11 // pred_fallthru
          _
        // Predicated region
        $region17: #{tpu_custom_call.1} parent=11 // pred_check
          %p178 = pneg %p76
        $region18: #{tpu_custom_call.1} parent=11 // pred_check_branch
          %180 = sbr.rel (%p178) target = $region20
        $region19: #{tpu_custom_call.1} parent=11 // pred_region
          %s181 = smul.u32 2, %s26
          %p182 = scmp.lt.s32.totalorder %s181, 1
          %s183 = scalar_select %p182, %s181, 1
          %s184 = smul.addr %s183, 8
          %s185 = scalar_lea.vmem %s1, %s184
          %s186 = smul.u32 2, %s26
        $region20: #{tpu_custom_call.1} parent=11 // pred_fallthru
          _
        // Predicated region
        $region21: #{tpu_custom_call.1} parent=11 // pred_check
          %p187 = pneg %p97
        $region22: #{tpu_custom_call.1} parent=11 // pred_check_branch
          %189 = sbr.rel (%p187) target = $region24
        $region23: #{tpu_custom_call.1} parent=11 // pred_region
          _
        $region24: #{tpu_custom_call.1} parent=11 // pred_fallthru
          _
      $region12: #{tpu_custom_call.1} parent=5 // pred_fallthru
        _
      %p190 = scmp.lt.s32.totalorder %s17, 2
      // Predicated region
      $region25: #{tpu_custom_call.1} parent=5 // pred_check
        %p191 = pneg %p190
      $region26: #{tpu_custom_call.1} parent=5 // pred_check_branch
        %193 = sbr.rel (%p191) target = $region28
      $region27: #{tpu_custom_call.1} parent=5 // pred_region
        // Predicated region
        $region29: #{tpu_custom_call.1} parent=27 // pred_check
          %p194 = pneg %p119
        $region30: #{tpu_custom_call.1} parent=27 // pred_check_branch
          %196 = sbr.rel (%p194) target = $region32
        $region31: #{tpu_custom_call.1} parent=27 // pred_region
          %s197 = sand.u32 %s109, 1
          %s198 = scalar_lea.sflag [#allocation3], %s197
          %s199 = sand.u32 %s109, 1
          %s200 = smul.addr %s199, 16
          %s201 = scalar_lea.vmem [#allocation6], %s200
          %s202 = smul.u32 2, %s24
          %204 = vsyncadd %s198, 0
          %s205 = smul.addr %s25, 2
          %s206 = sadd.s32 %s202, %s205
          %s207 = smul.addr %s206, 8
          %s208 = scalar_lea.hbm %s3, %s207
          %s209 = sshll.u32 %s208, 4
          %s210 = int_to_ptr.hbm [resolvable:$true] %s209
          %s211 = sshll.u32 %s201, 4
          %s212 = int_to_ptr.vmem [resolvable:$true] %s211
          %217 = dma.hbm_to_vmem [thread:$0]  %s210, 256, %s212, %s198, 128, 128, 8
        $region32: #{tpu_custom_call.1} parent=27 // pred_fallthru
          _
      $region28: #{tpu_custom_call.1} parent=5 // pred_fallthru
        _
      %p218 = scmp.le.s32.totalorder 1, %s17
      %p219 = scmp.lt.s32.totalorder %s17, 3
      %p220 = pnand %p218, %p219
      %p221 = pneg %p220
      // Predicated region
      $region33: #{tpu_custom_call.1} parent=5 // pred_check
        _
      $region34: #{tpu_custom_call.1} parent=5 // pred_check_branch
        %223 = sbr.rel (%p220) target = $region36
      $region35: #{tpu_custom_call.1} parent=5 // pred_region
        %s224 = ssub.s32 %s17, 1
        // Predicated region
        $region37: #{tpu_custom_call.1} parent=35 // pred_check
          %p225 = pneg %p50
        $region38: #{tpu_custom_call.1} parent=35 // pred_check_branch
          %227 = sbr.rel (%p225) target = $region40
        $region39: #{tpu_custom_call.1} parent=35 // pred_region
          %229 = dma.done [#allocation5], 16
        $region40: #{tpu_custom_call.1} parent=35 // pred_fallthru
          _
        %s230 = sand.u32 %s112, 1
        %s231 = scalar_lea.sflag [#allocation3], %s230
        %s232 = sand.u32 %s112, 1
        %s233 = smul.addr %s232, 16
        %s234 = scalar_lea.vmem [#allocation6], %s233
        // Predicated region
        $region41: #{tpu_custom_call.1} parent=35 // pred_check
          %p235 = pneg %p125
        $region42: #{tpu_custom_call.1} parent=35 // pred_check_branch
          %237 = sbr.rel (%p235) target = $region44
        $region43: #{tpu_custom_call.1} parent=35 // pred_region
          %239 = dma.done %s231, 256
        $region44: #{tpu_custom_call.1} parent=35 // pred_fallthru
          _
        %240 = sfence
        %p241 = pneg %p50
        %p242 = pneg %p47
        %s243 = smul.u32 2, %s26
        %p244 = scmp.lt.s32.totalorder %s243, 1
        %s245 = scalar_select %p244, %s243, 1
        %s246 = smul.addr %s245, 8
        %s247 = scalar_lea.vmem %s1, %s246
        %p248 = pneg %p76
        %p249 = pneg %p73
        %p250 = pneg %p97
        %p251 = pneg %p94
        %s252 = sand.u32 %s112, 1
        %s253 = scalar_lea.sflag [#allocation3], %s252
        %s254 = sand.u32 %s112, 1
        %s255 = smul.addr %s254, 16
        %s256 = scalar_lea.vmem [#allocation6], %s255
        %p257 = pneg %p125
        %p258 = pneg %p122
        %p259 = pneg %p153
        %p260 = pneg %p150
        %s261 = sand.u32 %s140, 1
        %s262 = scalar_lea.sflag [#allocation4], %s261
        %s263 = sand.u32 %s140, 1
        %s264 = smul.addr %s263, 32
        %s265 = scalar_lea.vmem [#allocation7], %s264
        %s266 = smul.u32 2, %s26
        %p267 = scmp.lt.s32.totalorder %s266, 1
        %s268 = scalar_select %p267, %s266, 1
        %s269 = smul.addr %s268, 8
        %s270 = scalar_lea.vmem %s1, %s269
        %s271 = smul.u32 2, %s26
        %s272 = smul.u32 2, %s26
        %s273 = smul.u32 2, %s26
        %s274 = smul.u32 %s27, 4
        %s275 = sld [smem:[#allocation2 + %s274]]
        %s276 = sadd.s32 %s274, 1
        %s277 = sld [smem:[#allocation2 + %s276]]
        %s278 = sadd.s32 %s274, 2
        %s279 = sld [smem:[#allocation2 + %s278]]
        %s280 = sadd.s32 %s274, 3
        %s281 = sld [smem:[#allocation2 + %s280]]
        %v282 = vld [vmem:[%s234] sm:$0xff]
        %v283 = vld [vmem:[%s234 + $0x8] sm:$0xff]
        %v284 = vld [vmem:[%s270] sm:$0xff]
        %v285 = vld [vmem:[%s270 + $0x8] sm:$0xff]
        %v286 = vld [vmem:[%s2] sm:$0x1]
        %v287 = vld [vmem:[%s2 + $0x1] sm:$0x1]
        %289 = vset.pattern.permute.xlu0 0
        %290 = vperm.xlu0 %289, %v284
        %v291 = vpop.permute.xlu0 %290
        %294 = vset.pattern.permute.xlu0 0
        %295 = vperm.xlu0 %294, %v285
        %v296 = vpop.permute.xlu0 %295
        %v298 = vmul.f32 %v282, %v291
        %v299 = vmul.f32 %v283, %v296
        %v300 = vperm.slane %v286, 0
        %v301 = vmul.f32 %v298, %v300
        %v302 = vmul.f32 %v299, %v300
        %v303 = vstv %s275
        %v304 = vadd.f32 %v301, %v303
        %v305 = vadd.f32 %v302, %v303
        %v306 = vperm.slane %v287, 0
        %v307 = vmul.f32 %v298, %v306
        %v308 = vmul.f32 %v299, %v306
        %v309 = vstv %s277
        %v310 = vadd.f32 %v307, %v309
        %v311 = vadd.f32 %v308, %v309
        %312 = vset.pattern.permute.xlu0 1
        %313 = vperm.xlu0 %312, %v284
        %v314 = vpop.permute.xlu0 %313
        %316 = vset.pattern.permute.xlu0 1
        %317 = vperm.xlu0 %316, %v285
        %v318 = vpop.permute.xlu0 %317
        %v320 = vmul.f32 %v282, %v314
        %v321 = vmul.f32 %v283, %v318
        %v322 = vstv %s279
        %v323 = vmul.f32 %v304, %v322
        %v324 = vmul.f32 %v305, %v322
        %v325 = vstv %s281
        %v326 = vmul.f32 %v310, %v325
        %v327 = vmul.f32 %v311, %v325
        %v328 = vsub.f32 %v323, %v326
        %v329 = vsub.f32 %v324, %v327
        %v330 = vmul.f32 %v304, %v325
        %v331 = vmul.f32 %v305, %v325
        %v332 = vmul.f32 %v310, %v322
        %v333 = vmul.f32 %v311, %v322
        %v334 = vadd.f32 %v330, %v332
        %v335 = vadd.f32 %v331, %v333
        %v336 = vmul.f32 %v328, %v328
        %v337 = vmul.f32 %v329, %v329
        %v338 = vmul.f32 %v334, %v334
        %v339 = vmul.f32 %v335, %v335
        %v340 = vadd.f32 %v336, %v338
        %v341 = vadd.f32 %v337, %v339
        %v342 = vmul.f32 %v320, %v320
        %v343 = vmul.f32 %v321, %v321
        %v344 = vadd.f32 %v340, %v342
        %v345 = vadd.f32 %v341, %v343
        %v346 = vrsqrt.pop %v344
        %v347 = vmul.f32 %v346, %v344
        %v348 = vmul.f32 %v347, %v346
        %v349 = vmul.f32 0.5, %v348
        %v350 = vsub.f32 1.5, %v349
        %v351 = vmul.f32 %v346, %v350
        %v352 = vmul.f32 %v344, %v351
        %vm353 = vcmp.eq.f32.partialorder %v344, inf
        %v354 = vsel %vm353, %v344, %v352
        %vm355 = vcmp.eq.f32.partialorder %v344, 0.0
        %v356 = vand.u32 %v344, 2147483648
        %v357 = vsel %vm355, %v356, %v354
        %v358 = vrsqrt.pop %v345
        %v359 = vmul.f32 %v358, %v345
        %v360 = vmul.f32 %v359, %v358
        %v361 = vmul.f32 0.5, %v360
        %v362 = vsub.f32 1.5, %v361
        %v363 = vmul.f32 %v358, %v362
        %v364 = vmul.f32 %v345, %v363
        %vm365 = vcmp.eq.f32.partialorder %v345, inf
        %v366 = vsel %vm365, %v345, %v364
        %vm367 = vcmp.eq.f32.partialorder %v345, 0.0
        %v368 = vand.u32 %v345, 2147483648
        %v369 = vsel %vm367, %v368, %v366
        %v370 = vadd.f32 %v357, 1e-05
        %v371 = vadd.f32 %v369, 1e-05
        %v372 = vrcp.pop %v370
        %v373 = vrcp.pop %v371
        %v374 = vmul.f32 %v370, %v372
        %v375 = vmul.f32 %v371, %v373
        %v376 = vsub.f32 2.0, %v374
        %v377 = vsub.f32 2.0, %v375
        %v378 = vmul.f32 %v372, %v376
        %v379 = vmul.f32 %v373, %v377
        %v380 = vmul.f32 %v320, %v378
        %v381 = vmul.f32 %v321, %v379
        %v382 = vsub.f32 1.0, %v380
        %v383 = vsub.f32 1.0, %v381
        %v384 = vadd.f32 %v380, 1.0
        %v385 = vadd.f32 %v381, 1.0
        %v386 = vmul.f32 %v382, %v384
        %v387 = vmul.f32 %v383, %v385
        %v388 = vrsqrt.pop %v386
        %v389 = vmul.f32 %v388, %v386
        %v390 = vmul.f32 %v389, %v388
        %v391 = vmul.f32 0.5, %v390
        %v392 = vsub.f32 1.5, %v391
        %v393 = vmul.f32 %v388, %v392
        %v394 = vmul.f32 %v386, %v393
        %vm395 = vcmp.eq.f32.partialorder %v386, inf
        %v396 = vsel %vm395, %v386, %v394
        %vm397 = vcmp.eq.f32.partialorder %v386, 0.0
        %v398 = vand.u32 %v386, 2147483648
        %v399 = vsel %vm397, %v398, %v396
        %v400 = vrsqrt.pop %v387
        %v401 = vmul.f32 %v400, %v387
        %v402 = vmul.f32 %v401, %v400
        %v403 = vmul.f32 0.5, %v402
        %v404 = vsub.f32 1.5, %v403
        %v405 = vmul.f32 %v400, %v404
        %v406 = vmul.f32 %v387, %v405
        %vm407 = vcmp.eq.f32.partialorder %v387, inf
        %v408 = vsel %vm407, %v387, %v406
        %vm409 = vcmp.eq.f32.partialorder %v387, 0.0
        %v410 = vand.u32 %v387, 2147483648
        %v411 = vsel %vm409, %v410, %v408
        %v412 = vmax.f32 %v399, 1e-30
        %v413 = vmax.f32 %v411, 1e-30
        %v414 = vrcp.pop %v412
        %v415 = vrcp.pop %v413
        %v416 = vmul.f32 %v412, %v414
        %v417 = vmul.f32 %v413, %v415
        %v418 = vsub.f32 2.0, %v416
        %v419 = vsub.f32 2.0, %v417
        %v420 = vmul.f32 %v414, %v418
        %v421 = vmul.f32 %v415, %v419
        %v422 = vmul.f32 %v380, %v420
        %v423 = vmul.f32 %v381, %v421
        %v424 = vand.u32 2147483647, %v422
        %v425 = vand.u32 2147483647, %v423
        %v426 = vmin.f32 %v424, 1e+30
        %v427 = vmin.f32 %v425, 1e+30
        %vm428 = vcmp.gt.f32.partialorder %v426, 2.4142137
        %vm429 = vcmp.gt.f32.partialorder %v427, 2.4142137
        %vm430 = vcmp.gt.f32.partialorder %v426, 0.41421357
        %vm431 = vcmp.gt.f32.partialorder %v427, 0.41421357
        %v432 = vsub.f32 %v426, 1.0
        %v433 = vsub.f32 %v427, 1.0
        %v434 = vsel %vm430, %v432, %v426
        %v435 = vsel %vm431, %v433, %v427
        %v436 = vsel %vm428, -1.0, %v434
        %v437 = vsel %vm429, -1.0, %v435
        %v438 = vadd.f32 %v426, 1.0
        %v439 = vadd.f32 %v427, 1.0
        %v440 = vsel %vm430, %v438, 1.0
        %v441 = vsel %vm431, %v439, 1.0
        %v442 = vsel %vm428, %v426, %v440
        %v443 = vsel %vm429, %v427, %v441
        %v444 = vrcp.pop %v442
        %v445 = vrcp.pop %v443
        %v446 = vmul.f32 %v442, %v444
        %v447 = vmul.f32 %v443, %v445
        %v448 = vsub.f32 2.0, %v446
        %v449 = vsub.f32 2.0, %v447
        %v450 = vmul.f32 %v444, %v448
        %v451 = vmul.f32 %v445, %v449
        %v452 = vmul.f32 %v436, %v450
        %v453 = vmul.f32 %v437, %v451
        %v454 = vsel %vm430, 0.7853982, 0.0
        %v455 = vsel %vm431, 0.7853982, 0.0
        %v456 = vsel %vm428, 1.5707964, %v454
        %v457 = vsel %vm429, 1.5707964, %v455
        %v458 = vmul.f32 %v452, %v452
        %v459 = vmul.f32 %v453, %v453
        %v460 = vmul.f32 %v458, 0.080537446
        %v461 = vmul.f32 %v459, 0.080537446
        %v462 = vsub.f32 %v460, 0.13877685
        %v463 = vsub.f32 %v461, 0.13877685
        %v464 = vmul.f32 %v462, %v458
        %v465 = vmul.f32 %v463, %v459
        %v466 = vadd.f32 %v464, 0.19977711
        %v467 = vadd.f32 %v465, 0.19977711
        %v468 = vmul.f32 %v466, %v458
        %v469 = vmul.f32 %v467, %v459
        %v470 = vsub.f32 %v468, 0.3333295
        %v471 = vsub.f32 %v469, 0.3333295
        %v472 = vmul.f32 %v470, %v458
        %v473 = vmul.f32 %v471, %v459
        %v474 = vmul.f32 %v472, %v452
        %v475 = vmul.f32 %v473, %v453
        %v476 = vadd.f32 %v474, %v452
        %v477 = vadd.f32 %v475, %v453
        %v478 = vadd.f32 %v456, %v476
        %v479 = vadd.f32 %v457, %v477
        %vm480 = vcmp.lt.f32.partialorder %v422, 0.0
        %vm481 = vcmp.lt.f32.partialorder %v423, 0.0
        %v482 = vsub.f32 0.0, %v478
        %v483 = vsub.f32 0.0, %v479
        %v484 = vsel %vm480, %v482, %v478
        %v485 = vsel %vm481, %v483, %v479
        %v486 = vsub.f32 1.5707964, %v484
        %v487 = vsub.f32 1.5707964, %v485
        %v488 = vmul.f32 %v486, 0.63661975
        %v489 = vmul.f32 %v487, 0.63661975
        %v490 = vsub.f32 %v488, 1.0
        %v491 = vsub.f32 %v489, 1.0
        %vm492 = vcmp.lt.f32.partialorder %v328, 0.0
        %vm493 = vcmp.lt.f32.partialorder %v329, 0.0
        %vm494 = vcmp.ge.f32.partialorder %v334, 0.0
        %vm495 = vcmp.ge.f32.partialorder %v335, 0.0
        %v496 = vsel %vm494, 3.1415927, -3.1415927
        %v497 = vsel %vm495, 3.1415927, -3.1415927
        %v498 = vsel %vm492, %v496, 0.0
        %v499 = vsel %vm493, %v497, 0.0
        %v500 = vadd.f32 %v328, 1e-05
        %v501 = vadd.f32 %v329, 1e-05
        %v502 = vrcp.pop %v500
        %v503 = vmul.f32 %v500, %v502
        %v504 = vsub.f32 1.0, %v503
        %v505 = vmul.f32 %v502, %v504
        %v506 = vadd.f32 %v502, %v505
        %vm507 = vweird.f32 %v500
        %vm508 = vweird.f32 %v502
        %vm509 = vmor %vm507, %vm508
        %v510 = vsel %vm509, %v502, %v506
        %v511 = vand.u32 2147483647, %v500
        %vm512 = vcmp.eq.f32.partialorder %v511, 8.507059e+37
        %v513 = vand.u32 %v500, 2147483648
        %v514 = vor.u32 1.1754944e-38, %v513
        %v515 = vsel %vm512, %v514, %v510
        %v516 = vmul.f32 %v334, %v515
        %v517 = vrcp.pop %v501
        %v518 = vmul.f32 %v501, %v517
        %v519 = vsub.f32 1.0, %v518
        %v520 = vmul.f32 %v517, %v519
        %v521 = vadd.f32 %v517, %v520
        %vm522 = vweird.f32 %v501
        %vm523 = vweird.f32 %v517
        %vm524 = vmor %vm522, %vm523
        %v525 = vsel %vm524, %v517, %v521
        %v526 = vand.u32 2147483647, %v501
        %vm527 = vcmp.eq.f32.partialorder %v526, 8.507059e+37
        %v528 = vand.u32 %v501, 2147483648
        %v529 = vor.u32 1.1754944e-38, %v528
        %v530 = vsel %vm527, %v529, %v525
        %v531 = vmul.f32 %v335, %v530
        %v532 = vand.u32 2147483647, %v516
        %v533 = vand.u32 2147483647, %v531
        %v534 = vmin.f32 %v532, 1e+30
        %v535 = vmin.f32 %v533, 1e+30
        %vm536 = vcmp.gt.f32.partialorder %v534, 2.4142137
        %vm537 = vcmp.gt.f32.partialorder %v535, 2.4142137
        %vm538 = vcmp.gt.f32.partialorder %v534, 0.41421357
        %vm539 = vcmp.gt.f32.partialorder %v535, 0.41421357
        %v540 = vsub.f32 %v534, 1.0
        %v541 = vsub.f32 %v535, 1.0
        %v542 = vsel %vm538, %v540, %v534
        %v543 = vsel %vm539, %v541, %v535
        %v544 = vsel %vm536, -1.0, %v542
        %v545 = vsel %vm537, -1.0, %v543
        %v546 = vadd.f32 %v534, 1.0
        %v547 = vadd.f32 %v535, 1.0
        %v548 = vsel %vm538, %v546, 1.0
        %v549 = vsel %vm539, %v547, 1.0
        %v550 = vsel %vm536, %v534, %v548
        %v551 = vsel %vm537, %v535, %v549
        %v552 = vrcp.pop %v550
        %v553 = vrcp.pop %v551
        %v554 = vmul.f32 %v550, %v552
        %v555 = vmul.f32 %v551, %v553
        %v556 = vsub.f32 2.0, %v554
        %v557 = vsub.f32 2.0, %v555
        %v558 = vmul.f32 %v552, %v556
        %v559 = vmul.f32 %v553, %v557
        %v560 = vmul.f32 %v544, %v558
        %v561 = vmul.f32 %v545, %v559
        %v562 = vsel %vm538, 0.7853982, 0.0
        %v563 = vsel %vm539, 0.7853982, 0.0
        %v564 = vsel %vm536, 1.5707964, %v562
        %v565 = vsel %vm537, 1.5707964, %v563
        %v566 = vmul.f32 %v560, %v560
        %v567 = vmul.f32 %v561, %v561
        %v568 = vmul.f32 %v566, 0.080537446
        %v569 = vmul.f32 %v567, 0.080537446
        %v570 = vsub.f32 %v568, 0.13877685
        %v571 = vsub.f32 %v569, 0.13877685
        %v572 = vmul.f32 %v570, %v566
        %v573 = vmul.f32 %v571, %v567
        %v574 = vadd.f32 %v572, 0.19977711
        %v575 = vadd.f32 %v573, 0.19977711
        %v576 = vmul.f32 %v574, %v566
        %v577 = vmul.f32 %v575, %v567
        %v578 = vsub.f32 %v576, 0.3333295
        %v579 = vsub.f32 %v577, 0.3333295
        %v580 = vmul.f32 %v578, %v566
        %v581 = vmul.f32 %v579, %v567
        %v582 = vmul.f32 %v580, %v560
        %v583 = vmul.f32 %v581, %v561
        %v584 = vadd.f32 %v582, %v560
        %v585 = vadd.f32 %v583, %v561
        %v586 = vadd.f32 %v564, %v584
        %v587 = vadd.f32 %v565, %v585
        %vm588 = vcmp.lt.f32.partialorder %v516, 0.0
        %vm589 = vcmp.lt.f32.partialorder %v531, 0.0
        %v590 = vsub.f32 0.0, %v586
        %v591 = vsub.f32 0.0, %v587
        %v592 = vsel %vm588, %v590, %v586
        %v593 = vsel %vm589, %v591, %v587
        %v594 = vadd.f32 %v592, %v498
        %v595 = vadd.f32 %v593, %v499
        %v596 = vmul.f32 %v594, 0.31830987
        %v597 = vmul.f32 %v595, 0.31830987
        %vm598 = vcmask 130048
        %599 = vst.msk [vmem:[%s265] sm:$0xff] %vm598, %v490
        %600 = vst.msk [vmem:[%s265 + $0x8] sm:$0xff] %vm598, %v491
        %s601 = scalar_lea.vmem %s265, 16 [#allocation7]
        %602 = vst.msk [vmem:[%s601] sm:$0xff] %vm598, %v596
        %603 = vst.msk [vmem:[%s601 + $0x8] sm:$0xff] %vm598, %v597
        %s604 = sand.u32 %s140, 1
        %s605 = scalar_lea.sflag [#allocation4], %s604
        %s606 = sand.u32 %s140, 1
        %s607 = smul.addr %s606, 32
        %s608 = scalar_lea.vmem [#allocation7], %s607
        // Predicated region
        $region45: #{tpu_custom_call.1} parent=35 // pred_check
          %p609 = pneg %p150
        $region46: #{tpu_custom_call.1} parent=35 // pred_check_branch
          %611 = sbr.rel (%p609) target = $region48
        $region47: #{tpu_custom_call.1} parent=35 // pred_region
          %s612 = smul.u32 2, %s26
          %614 = vsyncadd %s605, 0
          %s615 = smul.addr %s27, 4
          %s616 = sadd.s32 %s612, %s615
          %s617 = smul.addr %s616, 8
          %s618 = scalar_lea.hbm %s4, %s617
          %s619 = sshll.u32 %s608, 4
          %s620 = int_to_ptr.vmem [resolvable:$true] %s619
          %s621 = sshll.u32 %s618, 4
          %s622 = int_to_ptr.hbm [resolvable:$true] %s621
          %627 = dma.vmem_to_hbm [thread:$0]  %s620, 512, %s622, %s605, 128, 128, 8
        $region48: #{tpu_custom_call.1} parent=35 // pred_fallthru
          _
      $region36: #{tpu_custom_call.1} parent=5 // pred_fallthru
        _
      %p628 = scmp.le.s32.totalorder 2, %s17
      // Predicated region
      $region49: #{tpu_custom_call.1} parent=5 // pred_check
        %p629 = pneg %p628
      $region50: #{tpu_custom_call.1} parent=5 // pred_check_branch
        %631 = sbr.rel (%p629) target = $region52
      $region51: #{tpu_custom_call.1} parent=5 // pred_region
        %s632 = ssub.s32 %s17, 2
        // Predicated region
        $region53: #{tpu_custom_call.1} parent=51 // pred_check
          %p633 = pneg %p156
        $region54: #{tpu_custom_call.1} parent=51 // pred_check_branch
          %635 = sbr.rel (%p633) target = $region56
        $region55: #{tpu_custom_call.1} parent=51 // pred_region
          %s636 = sand.u32 %s141, 1
          %s637 = scalar_lea.sflag [#allocation4], %s636
          %s638 = sand.u32 %s141, 1
          %s639 = smul.addr %s638, 32
          %s640 = scalar_lea.vmem [#allocation7], %s639
          %642 = dma.done %s637, 512
        $region56: #{tpu_custom_call.1} parent=51 // pred_fallthru
          _
      $region52: #{tpu_custom_call.1} parent=5 // pred_fallthru
        _
    $region6: #{tpu_custom_call.1} parent=1 // loop_footer
      %s21 = sadd.s32 1, %s17
    $region7: #{tpu_custom_call.1} parent=1 // loop_footer_branch
      %16 = sbr.rel target = $region3
    $region8: #{tpu_custom_call.1} parent=1 // loop_exit
      _
    %643 = vsyncpa [#allocation3], 1
    %s644 = scalar_lea.sflag [#allocation3], 1
    %645 = vsyncpa %s644, 1
    %646 = vsyncpa [#allocation4], 1
    %s647 = scalar_lea.sflag [#allocation4], 1
    %648 = vsyncpa %s647, 1
    %649 = vsyncpa [#allocation5], 1
    %s650 = scalar_lea.sflag [#allocation5], 1
    %651 = vsyncpa %s650, 1

</llo_original>
